<compile_context>
chip_gen: v7x
topology: tpu7x:2x2x1
jax: 0.10.0
libtpu: 0.0.40
codegen_flags: <defaults>
</compile_context>

<pallas_src>
import jax
import jax.numpy as jnp
from jax.experimental import pallas as pl
from jax.experimental.pallas import tpu as pltpu

SMOOTH = 1e-5
_LANE = 128
_SUBLANE = 8


def _round_up(x, m):
    return (x + m - 1) // m * m


def _cdiv(a, b):
    return (a + b - 1) // b


def _make_dice_rows_kernel(t_hw, hw_total, needs_hw_mask):
    """Build the kernel with static tile width / HW extent closed over."""

    def kernel(pred_ref, targ_ref, dice_ref, acc_i, acc_u):
        j = pl.program_id(1)

        @pl.when(j == 0)
        def _():
            acc_i[...] = jnp.zeros_like(acc_i)
            acc_u[...] = jnp.zeros_like(acc_u)

        # Inputs may stream as bf16 (half the HBM bytes); upcast for f32
        # accumulation and the final division.
        p = pred_ref[...].astype(jnp.float32)
        t = targ_ref[...].astype(jnp.float32)

        if needs_hw_mask:
            # Ragged last HW tile: zero the out-of-bounds lanes so they do not
            # contribute to the row sums (DMA-clamped region is garbage).
            lane = jax.lax.broadcasted_iota(jnp.int32, p.shape, 1)
            valid = (j * t_hw + lane) < hw_total
            p = jnp.where(valid, p, 0.0)
            t = jnp.where(valid, t, 0.0)

        # Two XLU reduces per tile: p*t and (p*p + t) fused on the VPU first.
        acc_i[...] += jnp.sum(p * t, axis=1, keepdims=True)
        acc_u[...] += jnp.sum(p * p + t, axis=1, keepdims=True)

        @pl.when(j == pl.num_programs(1) - 1)
        def _():
            dice_ref[...] = (2.0 * acc_i[...] + SMOOTH) / (acc_u[...] + SMOOTH)

    return kernel


def dice_loss(predict, target, weight=None, *, tile_nc=256, tile_hw=None,
              cast_target_bf16=True):
    """predict: [N, C, H, W] (f32/bf16); target: [N, C, H, W] dense 0/1 mask
    (f32/bf16); weight: optional [C]. Returns scalar f32 dice loss.

    cast_target_bf16: stream the target as bf16 (exact for 0/1 masks, halves
    its HBM traffic). Set False if target holds arbitrary float values.
    """
    N, C, H, W = predict.shape
    NC, HW = N * C, H * W

    pred2d = predict.reshape(NC, HW)
    targ2d = target.reshape(NC, HW)
    if cast_target_bf16 and targ2d.dtype == jnp.float32:
        targ2d = targ2d.astype(jnp.bfloat16)

    # ---- tiling -------------------------------------------------------------
    t_nc = min(tile_nc, _round_up(NC, _SUBLANE))
    # v7x has 2 TensorCores: make sure the "parallel" NC axis has >= 2 blocks
    # whenever NC can be split at sublane granularity (no-op on v5e/v6e).
    if _cdiv(NC, t_nc) < 2 and NC > _SUBLANE:
        t_nc = _round_up(_cdiv(NC, 2), _SUBLANE)

    if tile_hw is None:
        # Size the HW tile so both input blocks together are ~8 MiB
        # (=> ~16 MiB double-buffered: amortizes per-step overhead, fits the
        # 48 MiB limit below and v7x's 64 MiB physical VMEM).
        per_col_bytes = t_nc * (pred2d.dtype.itemsize + targ2d.dtype.itemsize)
        budget_bytes = 8 * 1024 * 1024
        t_hw = max(_LANE, (budget_bytes // per_col_bytes) // _LANE * _LANE)
    else:
        t_hw = _round_up(tile_hw, _LANE)
    t_hw = min(t_hw, _round_up(HW, _LANE))

    grid = (_cdiv(NC, t_nc), _cdiv(HW, t_hw))
    needs_hw_mask = (HW % t_hw) != 0

    dice_rows = pl.pallas_call(
        _make_dice_rows_kernel(t_hw, HW, needs_hw_mask),
        out_shape=jax.ShapeDtypeStruct((NC, 1), jnp.float32),
        grid_spec=pltpu.PrefetchScalarGridSpec(
            num_scalar_prefetch=0,
            grid=grid,
            in_specs=[
                pl.BlockSpec((t_nc, t_hw), lambda i, j: (i, j)),
                pl.BlockSpec((t_nc, t_hw), lambda i, j: (i, j)),
            ],
            out_specs=pl.BlockSpec((t_nc, 1), lambda i, j: (i, 0)),
            scratch_shapes=[
                pltpu.VMEM((t_nc, 1), jnp.float32),
                pltpu.VMEM((t_nc, 1), jnp.float32),
            ],
        ),
        compiler_params=pltpu.CompilerParams(
            dimension_semantics=("parallel", "arbitrary"),
            # ~16 MiB of live blocks + scratch + headroom; safe on v7x's
            # 64 MiB physical VMEM, above v5e's 16 MiB scoped default.
            vmem_limit_bytes=48 * 1024 * 1024,
        ),
    )(pred2d, targ2d)

    # Weight + mean epilogue in plain JAX (negligible work on N*C values).
    dice = dice_rows[:, 0].reshape(N, C)
    if weight is not None:
        dice = dice * jnp.asarray(weight, dtype=jnp.float32)[None, :]
    return 1.0 - jnp.mean(dice)


def dice_loss_ref(predict, target, weight=None):
    # Pure-JAX reference mirroring the PyTorch forward (f32 accumulation).
    p = predict.astype(jnp.float32)
    t = target.astype(jnp.float32)
    intersection = jnp.sum(p * t, axis=(2, 3))
    union = jnp.sum(p * p, axis=(2, 3)) + jnp.sum(t, axis=(2, 3))
    dice_coef = (2.0 * intersection + SMOOTH) / (union + SMOOTH)
    if weight is not None:
        dice_coef = dice_coef * jnp.asarray(weight, dtype=jnp.float32)[None, :]
    return 1.0 - jnp.mean(dice_coef)


def _make_inputs(key, N, C, H, W, dtype):
    k1, k2 = jax.random.split(key)
    predict = jax.nn.softmax(
        jax.random.normal(k1, (N, C, H, W), dtype=jnp.float32), axis=1
    ).astype(dtype)
    labels = jax.random.randint(k2, (N, H, W), 0, C)
    target = jax.nn.one_hot(labels, C, dtype=jnp.float32)   # [N, H, W, C]
    target = jnp.transpose(target, (0, 3, 1, 2)).astype(dtype)  # [N, C, H, W]
    return predict, target


if __name__ == "__main__":
    key = jax.random.PRNGKey(0)
    ka, kb, kc = jax.random.split(key, 3)

    # --- case 1: small shape, f32 predict, per-channel weight, default tiles
    #     (single block, target streamed as bf16 exactly) --------------------
    N, C, H, W = 2, 4, 16, 16
    predict, target = _make_inputs(ka, N, C, H, W, jnp.float32)
    weight = jnp.linspace(0.5, 1.5, C, dtype=jnp.float32)

    loss = jax.block_until_ready(dice_loss(predict, target, weight))
    ref = dice_loss_ref(predict, target, weight)
    assert jnp.allclose(loss, ref, rtol=1e-5, atol=1e-6), (loss, ref)

    # --- case 2: both inputs bf16, partial NC block (NC=6 < t_nc=8),
    #     multi-step HW reduction (tile_hw=128 -> 2 steps), no weight --------
    N2, C2, H2, W2 = 2, 3, 16, 16
    predict2, target2 = _make_inputs(kb, N2, C2, H2, W2, jnp.bfloat16)
    loss2 = jax.block_until_ready(
        dice_loss(predict2, target2, None, tile_nc=8, tile_hw=128))
    ref2 = dice_loss_ref(predict2, target2, None)
    assert jnp.allclose(loss2, ref2, rtol=1e-4, atol=1e-5), (loss2, ref2)

    # --- case 3: ragged HW (H=W=18 -> HW=324, last 128-lane tile only 68
    #     valid) + ragged NC, exercising the in-kernel tail mask -------------
    N3, C3, H3, W3 = 2, 3, 18, 18
    predict3, target3 = _make_inputs(kc, N3, C3, H3, W3, jnp.float32)
    weight3 = jnp.linspace(0.8, 1.2, C3, dtype=jnp.float32)
    loss3 = jax.block_until_ready(
        dice_loss(predict3, target3, weight3, tile_nc=8, tile_hw=128))
    ref3 = dice_loss_ref(predict3, target3, weight3)
    assert jnp.allclose(loss3, ref3, rtol=1e-5, atol=1e-6), (loss3, ref3)

    print("KERNEL_OK")
</pallas_src>

<mosaic_0001>
module attributes {stable_mosaic.version = 11 : i64} {
  func.func @kernel(%arg0: i32, %arg1: i32, %arg2: memref<8x256xf32, #tpu.memory_space<vmem>>, %arg3: memref<8x256xbf16, #tpu.memory_space<vmem>>, %arg4: memref<8x1xf32, #tpu.memory_space<vmem>>, %arg5: memref<8x1xf32, #tpu.memory_space<vmem>>, %arg6: memref<8x1xf32, #tpu.memory_space<vmem>>) attributes {dimension_semantics = [#tpu.dimension_semantics<parallel>, #tpu.dimension_semantics<arbitrary>], iteration_bounds = array<i64: 1, 1>, scalar_prefetch = 0 : i64, scratch_operands = 2 : i64, tpu.core_type = #tpu.core_type<tc>, window_params = [{transform_indices = @transform_0, window_bounds = array<i64: 8, 256>}, {transform_indices = @transform_1, window_bounds = array<i64: 8, 256>}, {transform_indices = @transform_2, window_bounds = array<i64: 8, 1>}]} {
    %c0_i32 = arith.constant 0 : i32
    %0 = arith.cmpi eq, %arg1, %c0_i32 : i32
    %1 = arith.extui %0 : i1 to i32
    %c0_i32_0 = arith.constant 0 : i32
    %2 = arith.cmpi ne, %1, %c0_i32_0 : i32
    scf.if %2 {
      %cst_15 = arith.constant 0.000000e+00 : f32
      %22 = vector.broadcast %cst_15 : f32 to vector<8x1xf32>
      %c0_16 = arith.constant 0 : index
      %c0_17 = arith.constant 0 : index
      %23 = vector.load %arg5[%c0_16, %c0_17] : memref<8x1xf32, #tpu.memory_space<vmem>>, vector<8x1xf32>
      tpu.vector_store %arg5[%c0_16, %c0_17], %22 {strides = array<i32>} : memref<8x1xf32, #tpu.memory_space<vmem>>, vector<8x1xf32>,
      %cst_18 = arith.constant 0.000000e+00 : f32
      %24 = vector.broadcast %cst_18 : f32 to vector<8x1xf32>
      %c0_19 = arith.constant 0 : index
      %c0_20 = arith.constant 0 : index
      %25 = vector.load %arg6[%c0_19, %c0_20] : memref<8x1xf32, #tpu.memory_space<vmem>>, vector<8x1xf32>
      tpu.vector_store %arg6[%c0_19, %c0_20], %24 {strides = array<i32>} : memref<8x1xf32, #tpu.memory_space<vmem>>, vector<8x1xf32>,
    } else {
    }
    %c0 = arith.constant 0 : index
    %c0_1 = arith.constant 0 : index
    %3 = vector.load %arg2[%c0, %c0_1] : memref<8x256xf32, #tpu.memory_space<vmem>>, vector<8x256xf32>
    %c0_2 = arith.constant 0 : index
    %c0_3 = arith.constant 0 : index
    %4 = vector.load %arg3[%c0_2, %c0_3] : memref<8x256xbf16, #tpu.memory_space<vmem>>, vector<8x256xbf16>
    %5 = arith.extf %4 : vector<8x256xbf16> to vector<8x256xf32>
    %c0_4 = arith.constant 0 : index
    %c0_5 = arith.constant 0 : index
    %6 = vector.load %arg5[%c0_4, %c0_5] : memref<8x1xf32, #tpu.memory_space<vmem>>, vector<8x1xf32>
    %7 = arith.mulf %3, %5 : vector<8x256xf32>
    %cst = arith.constant dense<0.000000e+00> : vector<8xf32>
    %8 = vector.multi_reduction <add>, %7, %cst [1] : vector<8x256xf32> to vector<8xf32>
    %9 = vector.shape_cast %8 : vector<8xf32> to vector<8x1xf32>
    %10 = arith.addf %6, %9 : vector<8x1xf32>
    %c0_6 = arith.constant 0 : index
    %c0_7 = arith.constant 0 : index
    %11 = vector.load %arg5[%c0_6, %c0_7] : memref<8x1xf32, #tpu.memory_space<vmem>>, vector<8x1xf32>
    tpu.vector_store %arg5[%c0_6, %c0_7], %10 {strides = array<i32>} : memref<8x1xf32, #tpu.memory_space<vmem>>, vector<8x1xf32>,
    %c0_8 = arith.constant 0 : index
    %c0_9 = arith.constant 0 : index
    %12 = vector.load %arg6[%c0_8, %c0_9] : memref<8x1xf32, #tpu.memory_space<vmem>>, vector<8x1xf32>
    %13 = arith.mulf %3, %3 : vector<8x256xf32>
    %14 = arith.addf %13, %5 : vector<8x256xf32>
    %cst_10 = arith.constant dense<0.000000e+00> : vector<8xf32>
    %15 = vector.multi_reduction <add>, %14, %cst_10 [1] : vector<8x256xf32> to vector<8xf32>
    %16 = vector.shape_cast %15 : vector<8xf32> to vector<8x1xf32>
    %17 = arith.addf %12, %16 : vector<8x1xf32>
    %c0_11 = arith.constant 0 : index
    %c0_12 = arith.constant 0 : index
    %18 = vector.load %arg6[%c0_11, %c0_12] : memref<8x1xf32, #tpu.memory_space<vmem>>, vector<8x1xf32>
    tpu.vector_store %arg6[%c0_11, %c0_12], %17 {strides = array<i32>} : memref<8x1xf32, #tpu.memory_space<vmem>>, vector<8x1xf32>,
    %c0_i32_13 = arith.constant 0 : i32
    %19 = arith.cmpi eq, %arg1, %c0_i32_13 : i32
    %20 = arith.extui %19 : i1 to i32
    %c0_i32_14 = arith.constant 0 : i32
    %21 = arith.cmpi ne, %20, %c0_i32_14 : i32
    scf.if %21 {
      %c0_15 = arith.constant 0 : index
      %c0_16 = arith.constant 0 : index
      %22 = vector.load %arg5[%c0_15, %c0_16] : memref<8x1xf32, #tpu.memory_space<vmem>>, vector<8x1xf32>
      %cst_17 = arith.constant 2.000000e+00 : f32
      %23 = vector.broadcast %cst_17 : f32 to vector<8x1xf32>
      %24 = arith.mulf %23, %22 : vector<8x1xf32>
      %cst_18 = arith.constant 9.99999974E-6 : f32
      %25 = vector.broadcast %cst_18 : f32 to vector<8x1xf32>
      %26 = arith.addf %24, %25 : vector<8x1xf32>
      %c0_19 = arith.constant 0 : index
      %c0_20 = arith.constant 0 : index
      %27 = vector.load %arg6[%c0_19, %c0_20] : memref<8x1xf32, #tpu.memory_space<vmem>>, vector<8x1xf32>
      %cst_21 = arith.constant 9.99999974E-6 : f32
      %28 = vector.broadcast %cst_21 : f32 to vector<8x1xf32>
      %29 = arith.addf %27, %28 : vector<8x1xf32>
      %30 = arith.divf %26, %29 : vector<8x1xf32>
      %c0_22 = arith.constant 0 : index
      %c0_23 = arith.constant 0 : index
      %31 = vector.load %arg4[%c0_22, %c0_23] : memref<8x1xf32, #tpu.memory_space<vmem>>, vector<8x1xf32>
      tpu.vector_store %arg4[%c0_22, %c0_23], %30 {strides = array<i32>} : memref<8x1xf32, #tpu.memory_space<vmem>>, vector<8x1xf32>,
    } else {
    }
    return
  }
  func.func @transform_0(%arg0: i32, %arg1: i32) -> (i32, i32) {
    %c0_i32 = arith.constant 0 : i32
    return %arg0, %arg1 : i32, i32
  }
  func.func @transform_1(%arg0: i32, %arg1: i32) -> (i32, i32) {
    %c0_i32 = arith.constant 0 : i32
    return %arg0, %arg1 : i32, i32
  }
  func.func @transform_2(%arg0: i32, %arg1: i32) -> (i32, i32) {
    %c0_i32 = arith.constant 0 : i32
    %c0_i32_0 = arith.constant 0 : i32
    return %arg0, %c0_i32 : i32, i32
  }
}

</mosaic_0001>

<llo_original>
// kernel: tpu_custom_call.1
$region0: #{tpu_custom_call.1}
  #allocation0 [shape = 'u32[]', space=smem, size = 0x4, offset = 0x4, fixed_abs, tag = 'smem constant byte address 0x4 - core index']
  #allocation1 [shape = 'u32[144,128]{1,0:T(1,128)}', space=vmem, size = 0x12000, scoped, tag = 'internal scratch']
  #allocation2 [shape = 'f32[8,1]{1,0:T(8,128)}', space=vmem, size = 0x1000, scoped, tag = 'scratch operand']
  #allocation3 [shape = 'f32[8,1]{1,0:T(8,128)}', space=vmem, size = 0x1000, scoped, tag = 'scratch operand']
  %s0 = inlined_call_operand.hbm [shape: f32[8,256], index: 0, kind: input, shape index: {}]
  %s1 = inlined_call_operand.hbm [shape: bf16[8,256], index: 1, kind: input, shape index: {}]
  %s2 = inlined_call_operand.vmem [shape: f32[8,1], index: 2, kind: output, shape index: {}]
  %s3 = sld [smem:[#allocation0]]
  $region34: #{tpu_custom_call.1} parent=0
    _
  %s5 = ssub.s32 1, %s3
  %s6 = scalar_select 0, %s5, %s3
  $region1: #{tpu_custom_call.1} parent=0
    #allocation4 [shape = 'u8[8192]{0}', space=vmem, size = 0x2000, scoped, tag = 'input window, operand 0, single buffered']
    #allocation5 [shape = 's32[1]{0}', space=sflag, size = 0x4, scoped, tag = 'scoped memory for tpu_custom_call.1']
    #allocation6 [shape = 'u8[4096]{0}', space=vmem, size = 0x1000, scoped, tag = 'input window, operand 1, single buffered']
    #allocation7 [shape = 's32[1]{0}', space=sflag, size = 0x4, scoped, tag = 'scoped memory for tpu_custom_call.1']
    %7 = vsyncpa [#allocation5], 0
    %8 = vsyncpa [#allocation7], 0
    // Predicated region
    $region2: #{tpu_custom_call.1} parent=1 // pred_check
      _
    $region3: #{tpu_custom_call.1} parent=1 // pred_check_branch
      %10 = sbr.rel (0) target = $region5
    $region4: #{tpu_custom_call.1} parent=1 // pred_region
      %s12 = ssub.s32 256, 256
      %13 = vsyncadd [#allocation5], %s12
      %s15 = sshll.u32 [#allocation4], 4
      %s16 = int_to_ptr.vmem [resolvable:$true] %s15
      %18 = dma.hbm_to_vmem [thread:$0]  %s0, 256, %s16, [#allocation5]
    $region5: #{tpu_custom_call.1} parent=1 // pred_fallthru
      _
    // Predicated region
    $region6: #{tpu_custom_call.1} parent=1 // pred_check
      _
    $region7: #{tpu_custom_call.1} parent=1 // pred_check_branch
      %20 = sbr.rel (0) target = $region9
    $region8: #{tpu_custom_call.1} parent=1 // pred_region
      %s22 = ssub.s32 128, 128
      %23 = vsyncadd [#allocation7], %s22
      %s25 = sshll.u32 [#allocation6], 4
      %s26 = int_to_ptr.vmem [resolvable:$true] %s25
      %28 = dma.hbm_to_vmem [thread:$0]  %s1, 128, %s26, [#allocation7]
    $region9: #{tpu_custom_call.1} parent=1 // pred_fallthru
      _
    // Predicated region
    $region10: #{tpu_custom_call.1} parent=1 // pred_check
      _
    $region11: #{tpu_custom_call.1} parent=1 // pred_check_branch
      %30 = sbr.rel (0) target = $region13
    $region12: #{tpu_custom_call.1} parent=1 // pred_region
      %31 = dma.done [#allocation5], 256
    $region13: #{tpu_custom_call.1} parent=1 // pred_fallthru
      _
    // Predicated region
    $region14: #{tpu_custom_call.1} parent=1 // pred_check
      _
    $region15: #{tpu_custom_call.1} parent=1 // pred_check_branch
      %33 = sbr.rel (0) target = $region17
    $region16: #{tpu_custom_call.1} parent=1 // pred_region
      %34 = dma.done [#allocation7], 128
    $region17: #{tpu_custom_call.1} parent=1 // pred_fallthru
      _
    %p35 = scmp.eq.s32.totalorder 0, 0
    // Predicated region
    $region18: #{tpu_custom_call.1} parent=1 // pred_check
      %p36 = pneg %p35
    $region19: #{tpu_custom_call.1} parent=1 // pred_check_branch
      %38 = sbr.rel (%p36) target = $region21
    $region20: #{tpu_custom_call.1} parent=1 // pred_region
      %vm39 = vcmask 7168
      %40 = vst.msk [vmem:[#allocation2] sm:$0xff] %vm39, 0.0
      %41 = vst.msk [vmem:[#allocation3] sm:$0xff] %vm39, 0.0
    $region21: #{tpu_custom_call.1} parent=1 // pred_fallthru
      _
    %v42 = vld [vmem:[#allocation4] sm:$0xff]
    %v43 = vld [vmem:[#allocation4 + $0x8] sm:$0xff]
    %v44 = vld [vmem:[#allocation6] sm:$0xff]
    %v45 = vunpack.c.l.bf16 %v44
    %v46 = vunpack.c.h.bf16 %v44
    %v47 = vld [vmem:[#allocation2] sm:$0xff]
    %v48 = vmul.f32 %v42, %v45
    %v49 = vmul.f32 %v43, %v46
    %v50 = vadd.f32 %v48, %v49
    %51 = vadd.xlane.f32.xlu0 %v50
    %v52 = vpop.xlane.xlu0 %51
    %v53 = vadd.f32 %v47, %v52
    %vm54 = vcmask 7168
    %55 = vst.msk [vmem:[#allocation2] sm:$0xff] %vm54, %v53
    %v56 = vld [vmem:[#allocation3] sm:$0xff]
    %v57 = vmul.f32 %v42, %v42
    %v58 = vmul.f32 %v43, %v43
    %v59 = vadd.f32 %v57, %v45
    %v60 = vadd.f32 %v58, %v46
    %v61 = vadd.f32 %v59, %v60
    %62 = vadd.xlane.f32.xlu0 %v61
    %v63 = vpop.xlane.xlu0 %62
    %v64 = vadd.f32 %v56, %v63
    %65 = vst.msk [vmem:[#allocation3] sm:$0xff] %vm54, %v64
    // Predicated region
    $region22: #{tpu_custom_call.1} parent=1 // pred_check
      %p66 = pneg %p35
    $region23: #{tpu_custom_call.1} parent=1 // pred_check_branch
      %68 = sbr.rel (%p66) target = $region25
    $region24: #{tpu_custom_call.1} parent=1 // pred_region
      %v69 = vld [vmem:[#allocation2] sm:$0xff]
      %v70 = vmul.f32 %v69, 2.0
      %v71 = vadd.f32 %v70, 1e-05
      %v72 = vld [vmem:[#allocation3] sm:$0xff]
      %v73 = vadd.f32 %v72, 1e-05
      %v74 = vrcp.pop %v73
      %v75 = vmul.f32 %v71, %v74
      %76 = vst.msk [vmem:[%s2] sm:$0xff] %vm54, %v75
    $region25: #{tpu_custom_call.1} parent=1 // pred_fallthru
      _
    // Predicated region
    $region26: #{tpu_custom_call.1} parent=1 // pred_check
      _
    $region27: #{tpu_custom_call.1} parent=1 // pred_check_branch
      %78 = sbr.rel (0) target = $region29
    $region28: #{tpu_custom_call.1} parent=1 // pred_region
      _
    $region29: #{tpu_custom_call.1} parent=1 // pred_fallthru
      _
    // Predicated region
    $region30: #{tpu_custom_call.1} parent=1 // pred_check
      _
    $region31: #{tpu_custom_call.1} parent=1 // pred_check_branch
      %80 = sbr.rel (0) target = $region33
    $region32: #{tpu_custom_call.1} parent=1 // pred_region
      _
    $region33: #{tpu_custom_call.1} parent=1 // pred_fallthru
      _
    %81 = vsyncpa [#allocation5], 1
    %82 = vsyncpa [#allocation7], 1

</llo_original>
